<compile_context>
chip_gen: v7x
topology: tpu7x:2x2x1
jax: 0.10.0
libtpu: 0.0.40
codegen_flags: <defaults>
</compile_context>

<pallas_src>
import jax
import jax.numpy as jnp
from jax.experimental import pallas as pl
from jax.experimental.pallas import tpu as pltpu

NEG_SLOPE = 0.1   # torch.nn.LeakyReLU(0.1)
BN_EPS = 1e-5     # torch.nn.BatchNorm1d default eps


def _leaky_relu(x):
    return jnp.where(x >= 0, x, NEG_SLOPE * x)


def _round_up(x, m):
    return (x + m - 1) // m * m


# ----------------------------------------------------------------------------
# Kernel.
# Activation slab s: (tb, pw) f32 = [eps | x | cond | 0]   (eps at lanes [0,latent))
# w_ref   : (7*pw, pw)  bf16, pw-row blocks:
#   0: enc W0' (BN folded), rows at the x lanes of s
#   1: enc W1      2: enc W2
#   3: dec W0' fused (z-rows at [0,latent), cond-rows at the cond lanes of s)
#   4: dec W1      5: dec W2      6: dec Wo
# wlv_ref : (pw, 2*pw) bf16 fused mu/log_var head (mu cols [0,latent),
#           log_var cols [pw,pw+latent))
# b_ref   : (8, 2*pw) f32 bias rows:
#   [e_b0', e_b1, e_b2, (mu|lv bias), d_b0', d_b1, d_b2, d_bo]
# out_ref : (tb, 4*pw) f32 = [ y | mu | lv(+kld at lane pw-1) | z_full ]
# ----------------------------------------------------------------------------
def _cvae_kernel(s_ref, w_ref, wlv_ref, b_ref, out_ref):
    pw = w_ref.shape[1]
    f32 = jnp.float32
    bf16 = jnp.bfloat16

    s = s_ref[...]                               # (tb, pw) f32

    def w(i):                                    # static sublane-aligned block
        return w_ref[pw * i:pw * (i + 1), :]

    def b(i):                                    # (1, pw) bias row
        return b_ref[i:i + 1, :pw]

    def dot(a, wb):                              # bf16 operands, f32 accumulate
        return jnp.dot(a.astype(bf16), wb, preferred_element_type=f32)

    # ---------------- encoder (BN folded into layer 0) ----------------
    h = _leaky_relu(dot(s, w(0)) + b(0))
    h = _leaky_relu(dot(h, w(1)) + b(1))
    h = _leaky_relu(dot(h, w(2)) + b(2))

    # fused mu / log_var head: one GEMM, split at the 128-aligned pw boundary
    mulv = dot(h, wlv_ref[...]) + b_ref[3:4, :]  # (tb, 2*pw)
    mu = mulv[:, :pw]                            # valid lanes [0, latent)
    lv = mulv[:, pw:]                            # valid lanes [0, latent)

    # ---------------- reparameterization ----------------
    std = jnp.exp(0.5 * lv)                      # one EUP exp; exp(lv) = std*std
    z = mu + s * std                             # = [z | x | cond | 0]  (pad lanes: std=1, mu=0)
    # pad / x / cond lanes contribute exactly 0 to the KLD sum (1 + 0 - 0 - 1)
    kld = -0.5 * jnp.sum(1.0 + lv - mu * mu - std * std, axis=-1, keepdims=True)

    # ---------------- decoder (layer-0 concat fused into one GEMM) ----------------
    g = _leaky_relu(dot(z, w(3)) + b(4))
    g = _leaky_relu(dot(g, w(4)) + b(5))
    g = _leaky_relu(dot(g, w(5)) + b(6))
    y = dot(g, w(6)) + b(7)                      # valid lanes [0, out_dim)

    # pack kld into the (exactly zero) last lane of the log_var piece
    lane = jax.lax.broadcasted_iota(jnp.int32, lv.shape, 1)
    lv_out = jnp.where(lane == pw - 1, kld, lv)

    # single lane-dense packed output store (4*pw lanes, multiple of 128)
    out_ref[...] = jnp.concatenate([y, mu, lv_out, z], axis=-1)


# ----------------------------------------------------------------------------
# Wrapper-side parameter packing (BN fold, slab consolidation, bf16 cast).
# ----------------------------------------------------------------------------
def _fold_bn(w, b, gamma, beta, rmean, rvar):
    # eval-mode BN folded into the preceding Linear (exact).
    s = gamma * jax.lax.rsqrt(rvar + BN_EPS)          # (1, H)
    return w * s, (b - rmean) * s + beta


def _place(rows, cols, a, r0=0, c0=0):
    out = jnp.zeros((rows, cols), jnp.float32)
    return out.at[r0:r0 + a.shape[0], c0:c0 + a.shape[1]].set(a.astype(jnp.float32))


def pack_cvae_params(enc_params, dec_params, input_dim, latent_dim, condition_dim):
    (ew0, eb0, eg, ebe, erm, erv, ew1, eb1, ew2, eb2, ewo, ebo) = enc_params
    (dw0, db0, dg, dbe, drm, drv, dw1, db1, dw2, db2, dwo, dbo) = dec_params

    enc_hidden = ew0.shape[1]
    dec_hidden = dw0.shape[1]
    out_dim = dwo.shape[1]
    in_w = latent_dim + input_dim + condition_dim
    # 128-lane alignment: full vreg / MXU lane width on all generations.
    pw = _round_up(max(in_w, enc_hidden, dec_hidden, out_dim), 128)

    ew0f, eb0f = _fold_bn(ew0, eb0, eg, ebe, erm, erv)
    dw0f, db0f = _fold_bn(dw0, db0, dg, dbe, drm, drv)

    x_off = latent_dim
    c_off = latent_dim + input_dim

    # fused decoder layer-0 weight (z rows + cond rows, x rows MUST stay zero)
    dec_w0 = jnp.zeros((pw, pw), jnp.float32)
    dec_w0 = dec_w0.at[:latent_dim, :dec_hidden].set(
        dw0f[:latent_dim, :].astype(jnp.float32))
    dec_w0 = dec_w0.at[c_off:c_off + condition_dim, :dec_hidden].set(
        dw0f[latent_dim:, :].astype(jnp.float32))

    w_blocks = [
        _place(pw, pw, ew0f, r0=x_off),   # 0: reads the x lanes of s
        _place(pw, pw, ew1),              # 1
        _place(pw, pw, ew2),              # 2
        dec_w0,                           # 3: fused decoder layer 0
        _place(pw, pw, dw1),              # 4
        _place(pw, pw, dw2),              # 5
        _place(pw, pw, dwo),              # 6
    ]
    w_slab = jnp.concatenate(w_blocks, axis=0).astype(jnp.bfloat16)   # (7*pw, pw)

    # fused mu / log_var head weight (pw, 2*pw)
    wlv = jnp.zeros((pw, 2 * pw), jnp.float32)
    wlv = wlv.at[:enc_hidden, :latent_dim].set(ewo[:, :latent_dim])
    wlv = wlv.at[:enc_hidden, pw:pw + latent_dim].set(ewo[:, latent_dim:])
    wlv_slab = wlv.astype(jnp.bfloat16)

    # bias slab (8, 2*pw) f32 (row 3 uses both halves for mu|lv)
    b3 = jnp.zeros((1, 2 * pw), jnp.float32)
    b3 = b3.at[:, :latent_dim].set(ebo[:, :latent_dim])
    b3 = b3.at[:, pw:pw + latent_dim].set(ebo[:, latent_dim:])
    b_rows = [
        _place(1, 2 * pw, eb0f), _place(1, 2 * pw, eb1), _place(1, 2 * pw, eb2),
        b3,
        _place(1, 2 * pw, db0f), _place(1, 2 * pw, db1), _place(1, 2 * pw, db2),
        _place(1, 2 * pw, dbo),
    ]
    b_slab = jnp.concatenate(b_rows, axis=0)                          # (8, 2*pw)
    return w_slab, wlv_slab, b_slab, pw


def cvae_forward(x, condition, eps, enc_params, dec_params, latent_dim, *,
                 batch_tile=None):
    """Full CVAE eval forward in one Pallas invocation. Returns (y, kld, l, z)."""
    B, input_dim = x.shape
    cond_dim = condition.shape[1]
    out_dim = dec_params[-2].shape[1]
    in_w = latent_dim + input_dim + cond_dim

    w_slab, wlv_slab, b_slab, pw = pack_cvae_params(
        enc_params, dec_params, input_dim, latent_dim, cond_dim)

    # activation slab [eps | x | cond | 0] (eps lanes align with mu lanes)
    # TODO(synk): at large B, fuse this slab assembly into the upstream producer
    # (it is an extra wrapper-side HBM round trip on the memory-bound path).
    in_slab = jnp.concatenate(
        [eps.astype(jnp.float32), x.astype(jnp.float32),
         condition.astype(jnp.float32),
         jnp.zeros((B, pw - in_w), jnp.float32)], axis=-1)

    # batch tiling: default 512-row tiles (sweepable); pad batch to a multiple
    # so tiling never silently degrades to one huge tile.  With >= 2 grid steps
    # the "parallel" batch axis is sharded across both v7x TensorCores.
    if batch_tile is None:
        batch_tile = 512
    tb = max(8, min(_round_up(B, 8), _round_up(batch_tile, 8)))
    Bp = _round_up(B, tb)
    if Bp != B:
        in_slab = jnp.pad(in_slab, ((0, Bp - B), (0, 0)))
    grid = (Bp // tb,)

    out_w = 4 * pw   # multiple of 128 -> unmasked stores

    # explicit scoped-VMEM limit (resident slabs + double-buffered IO tiles)
    est = (2 * (tb * pw + tb * out_w) * 4
           + 2 * (w_slab.size * 2 + wlv_slab.size * 2 + b_slab.size * 4))
    vmem_limit = int(min(96 * 2**20, max(2 * est, 32 * 2**20)))

    out = pl.pallas_call(
        _cvae_kernel,
        out_shape=jax.ShapeDtypeStruct((Bp, out_w), jnp.float32),
        grid=grid,
        in_specs=[
            pl.BlockSpec((tb, pw), lambda i: (i, 0)),          # activations: batch-tiled
            pl.BlockSpec(w_slab.shape, lambda i: (0, 0)),      # weights: resident
            pl.BlockSpec(wlv_slab.shape, lambda i: (0, 0)),    # mu/lv head: resident
            pl.BlockSpec(b_slab.shape, lambda i: (0, 0)),      # biases: resident
        ],
        out_specs=pl.BlockSpec((tb, out_w), lambda i: (i, 0)),
        compiler_params=pltpu.CompilerParams(
            dimension_semantics=("parallel",),
            vmem_limit_bytes=vmem_limit),
    )(in_slab, w_slab, wlv_slab, b_slab)

    out = out[:B]
    # unpack the lane-dense slab (cheap XLA slices outside the kernel)
    y = out[:, :out_dim]
    mu = out[:, pw:pw + latent_dim]
    log_var = out[:, 2 * pw:2 * pw + latent_dim]
    kld = out[:, 3 * pw - 1:3 * pw]
    z = out[:, 3 * pw:3 * pw + latent_dim]
    l = jnp.concatenate([mu, log_var], axis=-1)
    return y, kld, l, z


# ----------------------------------------------------------------------------
# Deterministic synthetic parameters and a pure-JAX reference (unfused f32,
# models the original PyTorch eval-mode semantics) for correctness checking.
# ----------------------------------------------------------------------------
def _make_fcnn_params(key, in_dim, hidden_dim, out_dim):
    ks = jax.random.split(key, 10)
    scale = 0.1

    def lin(k, din, dout):
        kw, kb = jax.random.split(k)
        return (scale * jax.random.normal(kw, (din, dout), jnp.float32),
                scale * jax.random.normal(kb, (1, dout), jnp.float32))

    w0, b0 = lin(ks[0], in_dim, hidden_dim)
    gamma = 1.0 + 0.1 * jax.random.normal(ks[1], (1, hidden_dim), jnp.float32)
    beta = 0.1 * jax.random.normal(ks[2], (1, hidden_dim), jnp.float32)
    rmean = 0.1 * jax.random.normal(ks[3], (1, hidden_dim), jnp.float32)
    rvar = 0.5 + jnp.abs(jax.random.normal(ks[4], (1, hidden_dim), jnp.float32))
    w1, b1 = lin(ks[5], hidden_dim, hidden_dim)
    w2, b2 = lin(ks[6], hidden_dim, hidden_dim)
    wo, bo = lin(ks[7], hidden_dim, out_dim)
    return (w0, b0, gamma, beta, rmean, rvar, w1, b1, w2, b2, wo, bo)


def _fcnn_ref(params, x):
    (w0, b0, g, be, rm, rv, w1, b1, w2, b2, wo, bo) = params
    hp = jax.lax.Precision.HIGHEST
    h = jnp.dot(x, w0, precision=hp) + b0
    h = (h - rm) * jax.lax.rsqrt(rv + BN_EPS) * g + be
    h = jnp.where(h >= 0, h, NEG_SLOPE * h)
    h = jnp.dot(h, w1, precision=hp) + b1
    h = jnp.where(h >= 0, h, NEG_SLOPE * h)
    h = jnp.dot(h, w2, precision=hp) + b2
    h = jnp.where(h >= 0, h, NEG_SLOPE * h)
    return jnp.dot(h, wo, precision=hp) + bo


def _cvae_ref(x, cond, eps, enc_params, dec_params, latent_dim):
    l = _fcnn_ref(enc_params, x)
    mu, log_var = l[:, :latent_dim], l[:, latent_dim:]
    z = mu + eps * jnp.exp(0.5 * log_var)
    kld = -0.5 * jnp.sum(1 + log_var - mu ** 2 - jnp.exp(log_var),
                         axis=-1, keepdims=True)
    y = _fcnn_ref(dec_params, jnp.concatenate([z, cond], axis=-1))
    return y, kld, l, z


if __name__ == "__main__":
    B = 8
    INPUT_DIM = 16
    LATENT_DIM = 8
    CONDITION_DIM = 4
    HIDDEN_DIM = 32
    OUTPUT_DIM = INPUT_DIM   # output_dim=None -> defaults to input_dim

    root = jax.random.PRNGKey(0)
    k_x, k_c, k_eps, k_enc, k_dec = jax.random.split(root, 5)

    x = jax.random.normal(k_x, (B, INPUT_DIM), jnp.float32)
    condition = jax.random.normal(k_c, (B, CONDITION_DIM), jnp.float32)
    eps = jax.random.normal(k_eps, (B, LATENT_DIM), jnp.float32)

    enc_params = _make_fcnn_params(k_enc, INPUT_DIM, HIDDEN_DIM, 2 * LATENT_DIM)
    dec_params = _make_fcnn_params(k_dec, LATENT_DIM + CONDITION_DIM,
                                   HIDDEN_DIM, OUTPUT_DIM)

    y, kld, l, z = jax.block_until_ready(
        cvae_forward(x, condition, eps, enc_params, dec_params, LATENT_DIM))

    # Pure-JAX f32 reference of the original module semantics.  The kernel uses
    # bf16 MXU operands (f32 accumulation), so tolerances are set accordingly;
    # kld additionally sums nearly-cancelling terms, hence its looser atol.
    y_r, kld_r, l_r, z_r = _cvae_ref(x, condition, eps, enc_params, dec_params,
                                     LATENT_DIM)
    checks = (("y", y, y_r, 3e-2, 3e-2),
              ("l", l, l_r, 3e-2, 3e-2),
              ("z", z, z_r, 3e-2, 3e-2),
              ("kld", kld, kld_r, 1.5e-1, 0.0))
    for name, got, want, atol, rtol in checks:
        assert got.shape == want.shape and got.dtype == want.dtype, name
        assert jnp.allclose(got, want, atol=atol, rtol=rtol), (
            f"{name} mismatch: max abs err {jnp.max(jnp.abs(got - want))}")

    print("KERNEL_OK")
</pallas_src>

<mosaic_0001>
module attributes {stable_mosaic.version = 11 : i64} {
  func.func @_cvae_kernel(%arg0: i32, %arg1: memref<8x128xf32, #tpu.memory_space<vmem>>, %arg2: memref<896x128xbf16, #tpu.memory_space<vmem>>, %arg3: memref<128x256xbf16, #tpu.memory_space<vmem>>, %arg4: memref<8x256xf32, #tpu.memory_space<vmem>>, %arg5: memref<8x512xf32, #tpu.memory_space<vmem>>) attributes {dimension_semantics = [#tpu.dimension_semantics<parallel>], iteration_bounds = array<i64: 1>, scalar_prefetch = 0 : i64, scratch_operands = 0 : i64, tpu.core_type = #tpu.core_type<tc>, window_params = [{transform_indices = @transform_0, window_bounds = array<i64: 8, 128>}, {pipeline_mode = #tpu.pipeline_mode<synchronous>, transform_indices = @transform_1, window_bounds = array<i64: 896, 128>}, {pipeline_mode = #tpu.pipeline_mode<synchronous>, transform_indices = @transform_2, window_bounds = array<i64: 128, 256>}, {pipeline_mode = #tpu.pipeline_mode<synchronous>, transform_indices = @transform_3, window_bounds = array<i64: 8, 256>}, {transform_indices = @transform_4, window_bounds = array<i64: 8, 512>}]} {
    %c0 = arith.constant 0 : index
    %c0_0 = arith.constant 0 : index
    %0 = vector.load %arg1[%c0, %c0_0] : memref<8x128xf32, #tpu.memory_space<vmem>>, vector<8x128xf32>
    %c0_1 = arith.constant 0 : index
    %c0_2 = arith.constant 0 : index
    %1 = vector.load %arg2[%c0_1, %c0_2] : memref<896x128xbf16, #tpu.memory_space<vmem>>, vector<128x128xbf16>
    %2 = arith.truncf %0 : vector<8x128xf32> to vector<8x128xbf16>
    %cst = arith.constant dense<0.000000e+00> : vector<8x128xf32>
    %3 = tpu.matmul %2, %1, %cst {dimension_numbers = #tpu.dot_dimension_numbers<[1], [0], [0], [1], [0, 0, 1, 1], [], []>} : vector<8x128xbf16>, vector<128x128xbf16>, vector<8x128xf32> -> vector<8x128xf32>
    %c0_3 = arith.constant 0 : index
    %c0_4 = arith.constant 0 : index
    %4 = vector.load %arg4[%c0_3, %c0_4] : memref<8x256xf32, #tpu.memory_space<vmem>>, vector<1x128xf32>
    %5 = vector.broadcast %4 : vector<1x128xf32> to vector<8x128xf32>
    %6 = arith.addf %3, %5 : vector<8x128xf32>
    %cst_5 = arith.constant 0.000000e+00 : f32
    %7 = vector.broadcast %cst_5 : f32 to vector<8x128xf32>
    %8 = arith.cmpf oge, %6, %7 : vector<8x128xf32>
    %cst_6 = arith.constant 1.000000e-01 : f32
    %9 = vector.broadcast %cst_6 : f32 to vector<8x128xf32>
    %10 = arith.mulf %9, %6 : vector<8x128xf32>
    %11 = arith.select %8, %6, %10 : vector<8x128xi1>, vector<8x128xf32>
    %c128 = arith.constant 128 : index
    %c0_7 = arith.constant 0 : index
    %12 = vector.load %arg2[%c128, %c0_7] : memref<896x128xbf16, #tpu.memory_space<vmem>>, vector<128x128xbf16>
    %13 = arith.truncf %11 : vector<8x128xf32> to vector<8x128xbf16>
    %cst_8 = arith.constant dense<0.000000e+00> : vector<8x128xf32>
    %14 = tpu.matmul %13, %12, %cst_8 {dimension_numbers = #tpu.dot_dimension_numbers<[1], [0], [0], [1], [0, 0, 1, 1], [], []>} : vector<8x128xbf16>, vector<128x128xbf16>, vector<8x128xf32> -> vector<8x128xf32>
    %c1 = arith.constant 1 : index
    %c0_9 = arith.constant 0 : index
    %15 = vector.load %arg4[%c1, %c0_9] : memref<8x256xf32, #tpu.memory_space<vmem>>, vector<1x128xf32>
    %16 = vector.broadcast %15 : vector<1x128xf32> to vector<8x128xf32>
    %17 = arith.addf %14, %16 : vector<8x128xf32>
    %cst_10 = arith.constant 0.000000e+00 : f32
    %18 = vector.broadcast %cst_10 : f32 to vector<8x128xf32>
    %19 = arith.cmpf oge, %17, %18 : vector<8x128xf32>
    %cst_11 = arith.constant 1.000000e-01 : f32
    %20 = vector.broadcast %cst_11 : f32 to vector<8x128xf32>
    %21 = arith.mulf %20, %17 : vector<8x128xf32>
    %22 = arith.select %19, %17, %21 : vector<8x128xi1>, vector<8x128xf32>
    %c256 = arith.constant 256 : index
    %c0_12 = arith.constant 0 : index
    %23 = vector.load %arg2[%c256, %c0_12] : memref<896x128xbf16, #tpu.memory_space<vmem>>, vector<128x128xbf16>
    %24 = arith.truncf %22 : vector<8x128xf32> to vector<8x128xbf16>
    %cst_13 = arith.constant dense<0.000000e+00> : vector<8x128xf32>
    %25 = tpu.matmul %24, %23, %cst_13 {dimension_numbers = #tpu.dot_dimension_numbers<[1], [0], [0], [1], [0, 0, 1, 1], [], []>} : vector<8x128xbf16>, vector<128x128xbf16>, vector<8x128xf32> -> vector<8x128xf32>
    %c2 = arith.constant 2 : index
    %c0_14 = arith.constant 0 : index
    %26 = vector.load %arg4[%c2, %c0_14] : memref<8x256xf32, #tpu.memory_space<vmem>>, vector<1x128xf32>
    %27 = vector.broadcast %26 : vector<1x128xf32> to vector<8x128xf32>
    %28 = arith.addf %25, %27 : vector<8x128xf32>
    %cst_15 = arith.constant 0.000000e+00 : f32
    %29 = vector.broadcast %cst_15 : f32 to vector<8x128xf32>
    %30 = arith.cmpf oge, %28, %29 : vector<8x128xf32>
    %cst_16 = arith.constant 1.000000e-01 : f32
    %31 = vector.broadcast %cst_16 : f32 to vector<8x128xf32>
    %32 = arith.mulf %31, %28 : vector<8x128xf32>
    %33 = arith.select %30, %28, %32 : vector<8x128xi1>, vector<8x128xf32>
    %c0_17 = arith.constant 0 : index
    %c0_18 = arith.constant 0 : index
    %34 = vector.load %arg3[%c0_17, %c0_18] : memref<128x256xbf16, #tpu.memory_space<vmem>>, vector<128x256xbf16>
    %35 = arith.truncf %33 : vector<8x128xf32> to vector<8x128xbf16>
    %cst_19 = arith.constant dense<0.000000e+00> : vector<8x256xf32>
    %36 = tpu.matmul %35, %34, %cst_19 {dimension_numbers = #tpu.dot_dimension_numbers<[1], [0], [0], [1], [0, 0, 1, 1], [], []>} : vector<8x128xbf16>, vector<128x256xbf16>, vector<8x256xf32> -> vector<8x256xf32>
    %c3 = arith.constant 3 : index
    %c0_20 = arith.constant 0 : index
    %37 = vector.load %arg4[%c3, %c0_20] : memref<8x256xf32, #tpu.memory_space<vmem>>, vector<1x256xf32>
    %38 = vector.broadcast %37 : vector<1x256xf32> to vector<8x256xf32>
    %39 = arith.addf %36, %38 : vector<8x256xf32>
    %40 = vector.extract_strided_slice %39 {offsets = [0, 0], sizes = [8, 128], strides = [1, 1]} : vector<8x256xf32> to vector<8x128xf32>
    %41 = vector.extract_strided_slice %39 {offsets = [0, 128], sizes = [8, 128], strides = [1, 1]} : vector<8x256xf32> to vector<8x128xf32>
    %cst_21 = arith.constant 5.000000e-01 : f32
    %42 = vector.broadcast %cst_21 : f32 to vector<8x128xf32>
    %43 = arith.mulf %42, %41 : vector<8x128xf32>
    %44 = math.exp %43 : vector<8x128xf32>
    %45 = arith.mulf %0, %44 : vector<8x128xf32>
    %46 = arith.addf %40, %45 : vector<8x128xf32>
    %cst_22 = arith.constant 1.000000e+00 : f32
    %47 = vector.broadcast %cst_22 : f32 to vector<8x128xf32>
    %48 = arith.addf %47, %41 : vector<8x128xf32>
    %49 = arith.mulf %40, %40 : vector<8x128xf32>
    %50 = arith.subf %48, %49 : vector<8x128xf32>
    %51 = arith.mulf %44, %44 : vector<8x128xf32>
    %52 = arith.subf %50, %51 : vector<8x128xf32>
    %cst_23 = arith.constant dense<0.000000e+00> : vector<8xf32>
    %53 = vector.multi_reduction <add>, %52, %cst_23 [1] : vector<8x128xf32> to vector<8xf32>
    %54 = vector.shape_cast %53 : vector<8xf32> to vector<8x1xf32>
    %cst_24 = arith.constant -5.000000e-01 : f32
    %55 = vector.broadcast %cst_24 : f32 to vector<8x1xf32>
    %56 = arith.mulf %55, %54 : vector<8x1xf32>
    %c384 = arith.constant 384 : index
    %c0_25 = arith.constant 0 : index
    %57 = vector.load %arg2[%c384, %c0_25] : memref<896x128xbf16, #tpu.memory_space<vmem>>, vector<128x128xbf16>
    %58 = arith.truncf %46 : vector<8x128xf32> to vector<8x128xbf16>
    %cst_26 = arith.constant dense<0.000000e+00> : vector<8x128xf32>
    %59 = tpu.matmul %58, %57, %cst_26 {dimension_numbers = #tpu.dot_dimension_numbers<[1], [0], [0], [1], [0, 0, 1, 1], [], []>} : vector<8x128xbf16>, vector<128x128xbf16>, vector<8x128xf32> -> vector<8x128xf32>
    %c4 = arith.constant 4 : index
    %c0_27 = arith.constant 0 : index
    %60 = vector.load %arg4[%c4, %c0_27] : memref<8x256xf32, #tpu.memory_space<vmem>>, vector<1x128xf32>
    %61 = vector.broadcast %60 : vector<1x128xf32> to vector<8x128xf32>
    %62 = arith.addf %59, %61 : vector<8x128xf32>
    %cst_28 = arith.constant 0.000000e+00 : f32
    %63 = vector.broadcast %cst_28 : f32 to vector<8x128xf32>
    %64 = arith.cmpf oge, %62, %63 : vector<8x128xf32>
    %cst_29 = arith.constant 1.000000e-01 : f32
    %65 = vector.broadcast %cst_29 : f32 to vector<8x128xf32>
    %66 = arith.mulf %65, %62 : vector<8x128xf32>
    %67 = arith.select %64, %62, %66 : vector<8x128xi1>, vector<8x128xf32>
    %c512 = arith.constant 512 : index
    %c0_30 = arith.constant 0 : index
    %68 = vector.load %arg2[%c512, %c0_30] : memref<896x128xbf16, #tpu.memory_space<vmem>>, vector<128x128xbf16>
    %69 = arith.truncf %67 : vector<8x128xf32> to vector<8x128xbf16>
    %cst_31 = arith.constant dense<0.000000e+00> : vector<8x128xf32>
    %70 = tpu.matmul %69, %68, %cst_31 {dimension_numbers = #tpu.dot_dimension_numbers<[1], [0], [0], [1], [0, 0, 1, 1], [], []>} : vector<8x128xbf16>, vector<128x128xbf16>, vector<8x128xf32> -> vector<8x128xf32>
    %c5 = arith.constant 5 : index
    %c0_32 = arith.constant 0 : index
    %71 = vector.load %arg4[%c5, %c0_32] : memref<8x256xf32, #tpu.memory_space<vmem>>, vector<1x128xf32>
    %72 = vector.broadcast %71 : vector<1x128xf32> to vector<8x128xf32>
    %73 = arith.addf %70, %72 : vector<8x128xf32>
    %cst_33 = arith.constant 0.000000e+00 : f32
    %74 = vector.broadcast %cst_33 : f32 to vector<8x128xf32>
    %75 = arith.cmpf oge, %73, %74 : vector<8x128xf32>
    %cst_34 = arith.constant 1.000000e-01 : f32
    %76 = vector.broadcast %cst_34 : f32 to vector<8x128xf32>
    %77 = arith.mulf %76, %73 : vector<8x128xf32>
    %78 = arith.select %75, %73, %77 : vector<8x128xi1>, vector<8x128xf32>
    %c640 = arith.constant 640 : index
    %c0_35 = arith.constant 0 : index
    %79 = vector.load %arg2[%c640, %c0_35] : memref<896x128xbf16, #tpu.memory_space<vmem>>, vector<128x128xbf16>
    %80 = arith.truncf %78 : vector<8x128xf32> to vector<8x128xbf16>
    %cst_36 = arith.constant dense<0.000000e+00> : vector<8x128xf32>
    %81 = tpu.matmul %80, %79, %cst_36 {dimension_numbers = #tpu.dot_dimension_numbers<[1], [0], [0], [1], [0, 0, 1, 1], [], []>} : vector<8x128xbf16>, vector<128x128xbf16>, vector<8x128xf32> -> vector<8x128xf32>
    %c6 = arith.constant 6 : index
    %c0_37 = arith.constant 0 : index
    %82 = vector.load %arg4[%c6, %c0_37] : memref<8x256xf32, #tpu.memory_space<vmem>>, vector<1x128xf32>
    %83 = vector.broadcast %82 : vector<1x128xf32> to vector<8x128xf32>
    %84 = arith.addf %81, %83 : vector<8x128xf32>
    %cst_38 = arith.constant 0.000000e+00 : f32
    %85 = vector.broadcast %cst_38 : f32 to vector<8x128xf32>
    %86 = arith.cmpf oge, %84, %85 : vector<8x128xf32>
    %cst_39 = arith.constant 1.000000e-01 : f32
    %87 = vector.broadcast %cst_39 : f32 to vector<8x128xf32>
    %88 = arith.mulf %87, %84 : vector<8x128xf32>
    %89 = arith.select %86, %84, %88 : vector<8x128xi1>, vector<8x128xf32>
    %c768 = arith.constant 768 : index
    %c0_40 = arith.constant 0 : index
    %90 = vector.load %arg2[%c768, %c0_40] : memref<896x128xbf16, #tpu.memory_space<vmem>>, vector<128x128xbf16>
    %91 = arith.truncf %89 : vector<8x128xf32> to vector<8x128xbf16>
    %cst_41 = arith.constant dense<0.000000e+00> : vector<8x128xf32>
    %92 = tpu.matmul %91, %90, %cst_41 {dimension_numbers = #tpu.dot_dimension_numbers<[1], [0], [0], [1], [0, 0, 1, 1], [], []>} : vector<8x128xbf16>, vector<128x128xbf16>, vector<8x128xf32> -> vector<8x128xf32>
    %c7 = arith.constant 7 : index
    %c0_42 = arith.constant 0 : index
    %93 = vector.load %arg4[%c7, %c0_42] : memref<8x256xf32, #tpu.memory_space<vmem>>, vector<1x128xf32>
    %94 = vector.broadcast %93 : vector<1x128xf32> to vector<8x128xf32>
    %95 = arith.addf %92, %94 : vector<8x128xf32>
    %96 = tpu.iota {dimensions = array<i32: 1>} : vector<8x128xi32>
    %c127_i32 = arith.constant 127 : i32
    %97 = vector.broadcast %c127_i32 : i32 to vector<8x128xi32>
    %98 = arith.cmpi eq, %96, %97 : vector<8x128xi32>
    %99 = vector.shape_cast %56 : vector<8x1xf32> to vector<8x1xf32>
    %100 = vector.broadcast %99 : vector<8x1xf32> to vector<8x128xf32>
    %101 = arith.select %98, %100, %41 : vector<8x128xi1>, vector<8x128xf32>
    %102 = tpu.concatenate %95, %40, %101, %46 in 1 : vector<8x128xf32>, vector<8x128xf32>, vector<8x128xf32>, vector<8x128xf32> -> vector<8x512xf32>
    %c0_43 = arith.constant 0 : index
    %c0_44 = arith.constant 0 : index
    %103 = vector.load %arg5[%c0_43, %c0_44] : memref<8x512xf32, #tpu.memory_space<vmem>>, vector<8x512xf32>
    tpu.vector_store %arg5[%c0_43, %c0_44], %102 {strides = array<i32>} : memref<8x512xf32, #tpu.memory_space<vmem>>, vector<8x512xf32>,
    return
  }
  func.func @transform_0(%arg0: i32) -> (i32, i32) {
    %c0_i32 = arith.constant 0 : i32
    %c0_i32_0 = arith.constant 0 : i32
    return %arg0, %c0_i32 : i32, i32
  }
  func.func @transform_1(%arg0: i32) -> (i32, i32) {
    %c0_i32 = arith.constant 0 : i32
    %c0_i32_0 = arith.constant 0 : i32
    %c0_i32_1 = arith.constant 0 : i32
    return %c0_i32, %c0_i32_0 : i32, i32
  }
  func.func @transform_2(%arg0: i32) -> (i32, i32) {
    %c0_i32 = arith.constant 0 : i32
    %c0_i32_0 = arith.constant 0 : i32
    %c0_i32_1 = arith.constant 0 : i32
    return %c0_i32, %c0_i32_0 : i32, i32
  }
  func.func @transform_3(%arg0: i32) -> (i32, i32) {
    %c0_i32 = arith.constant 0 : i32
    %c0_i32_0 = arith.constant 0 : i32
    %c0_i32_1 = arith.constant 0 : i32
    return %c0_i32, %c0_i32_0 : i32, i32
  }
  func.func @transform_4(%arg0: i32) -> (i32, i32) {
    %c0_i32 = arith.constant 0 : i32
    %c0_i32_0 = arith.constant 0 : i32
    return %arg0, %c0_i32 : i32, i32
  }
}

</mosaic_0001>

<llo_original>
// kernel: tpu_custom_call.1
$region0: #{tpu_custom_call.1}
  #allocation0 [shape = 'u32[]', space=smem, size = 0x4, offset = 0x4, fixed_abs, tag = 'smem constant byte address 0x4 - core index']
  #allocation1 [shape = 'u32[144,128]{1,0:T(1,128)}', space=vmem, size = 0x12000, scoped, tag = 'internal scratch']
  %s0 = inlined_call_operand.hbm [shape: f32[8,128], index: 0, kind: input, shape index: {}]
  %s1 = inlined_call_operand.hbm [shape: bf16[896,128], index: 1, kind: input, shape index: {}]
  %s2 = inlined_call_operand.hbm [shape: bf16[128,256], index: 2, kind: input, shape index: {}]
  %s3 = inlined_call_operand.hbm [shape: f32[8,256], index: 3, kind: input, shape index: {}]
  %s4 = inlined_call_operand.hbm [shape: f32[8,512], index: 4, kind: output, shape index: {}]
  %s5 = sld [smem:[#allocation0]]
  $region42: #{tpu_custom_call.1} parent=0
    _
  %s7 = ssub.s32 1, %s5
  %s8 = scalar_select 0, %s7, %s5
  $region1: #{tpu_custom_call.1} parent=0
    #allocation2 [shape = 'u8[4096]{0}', space=vmem, size = 0x1000, scoped, tag = 'input window, operand 0, single buffered']
    #allocation3 [shape = 's32[1]{0}', space=sflag, size = 0x4, scoped, tag = 'scoped memory for tpu_custom_call.1']
    #allocation4 [shape = 's32[1]{0}', space=sflag, size = 0x4, scoped, tag = 'scoped memory for tpu_custom_call.1']
    #allocation5 [shape = 'u8[229376]{0}', space=vmem, size = 0x38000, scoped, tag = 'input window, operand 1, single buffered']
    #allocation6 [shape = 's32[1]{0}', space=sflag, size = 0x4, scoped, tag = 'scoped memory for tpu_custom_call.1']
    #allocation7 [shape = 'u8[65536]{0}', space=vmem, size = 0x10000, scoped, tag = 'input window, operand 2, single buffered']
    #allocation8 [shape = 'u8[8192]{0}', space=vmem, size = 0x2000, scoped, tag = 'input window, operand 3, single buffered']
    #allocation9 [shape = 's32[1]{0}', space=sflag, size = 0x4, scoped, tag = 'scoped memory for tpu_custom_call.1']
    #allocation10 [shape = 'u8[16384]{0}', space=vmem, size = 0x4000, scoped, tag = 'output window, operand 0, single buffered']
    %9 = vsyncpa [#allocation3], 0
    %10 = vsyncpa [#allocation6], 0
    %11 = vsyncpa [#allocation9], 0
    %12 = vsyncpa [#allocation4], 0
    // Predicated region
    $region2: #{tpu_custom_call.1} parent=1 // pred_check
      _
    $region3: #{tpu_custom_call.1} parent=1 // pred_check_branch
      %14 = sbr.rel (0) target = $region5
    $region4: #{tpu_custom_call.1} parent=1 // pred_region
      %s16 = ssub.s32 128, 128
      %17 = vsyncadd [#allocation3], %s16
      %s19 = sshll.u32 [#allocation2], 4
      %s20 = int_to_ptr.vmem [resolvable:$true] %s19
      %22 = dma.hbm_to_vmem [thread:$0]  %s0, 128, %s20, [#allocation3]
    $region5: #{tpu_custom_call.1} parent=1 // pred_fallthru
      _
    // Predicated region
    $region6: #{tpu_custom_call.1} parent=1 // pred_check
      _
    $region7: #{tpu_custom_call.1} parent=1 // pred_check_branch
      %24 = sbr.rel (0) target = $region9
    $region8: #{tpu_custom_call.1} parent=1 // pred_region
      %s26 = ssub.s32 7168, 7168
      %27 = vsyncadd [#allocation6], %s26
      %s28 = sshll.u32 [#allocation5], 4
      %s29 = int_to_ptr.vmem [resolvable:$true] %s28
      %34 = dma.hbm_to_vmem [thread:$0]  %s1, 7168, %s29, [#allocation6], 64, 64, 4
    $region9: #{tpu_custom_call.1} parent=1 // pred_fallthru
      _
    // Predicated region
    $region10: #{tpu_custom_call.1} parent=1 // pred_check
      _
    $region11: #{tpu_custom_call.1} parent=1 // pred_check_branch
      %36 = sbr.rel (0) target = $region13
    $region12: #{tpu_custom_call.1} parent=1 // pred_region
      %s38 = ssub.s32 2048, 2048
      %39 = vsyncadd [#allocation6], %s38
      %s40 = sshll.u32 [#allocation7], 4
      %s41 = int_to_ptr.vmem [resolvable:$true] %s40
      %46 = dma.hbm_to_vmem [thread:$0]  %s2, 2048, %s41, [#allocation6], 128, 128, 8
    $region13: #{tpu_custom_call.1} parent=1 // pred_fallthru
      _
    // Predicated region
    $region14: #{tpu_custom_call.1} parent=1 // pred_check
      _
    $region15: #{tpu_custom_call.1} parent=1 // pred_check_branch
      %48 = sbr.rel (0) target = $region17
    $region16: #{tpu_custom_call.1} parent=1 // pred_region
      %s50 = ssub.s32 256, 256
      %51 = vsyncadd [#allocation9], %s50
      %s53 = sshll.u32 [#allocation8], 4
      %s54 = int_to_ptr.vmem [resolvable:$true] %s53
      %56 = dma.hbm_to_vmem [thread:$0]  %s3, 256, %s54, [#allocation9]
    $region17: #{tpu_custom_call.1} parent=1 // pred_fallthru
      _
    // Predicated region
    $region18: #{tpu_custom_call.1} parent=1 // pred_check
      _
    $region19: #{tpu_custom_call.1} parent=1 // pred_check_branch
      %58 = sbr.rel (0) target = $region21
    $region20: #{tpu_custom_call.1} parent=1 // pred_region
      %59 = dma.done [#allocation3], 128
    $region21: #{tpu_custom_call.1} parent=1 // pred_fallthru
      _
    // Predicated region
    $region22: #{tpu_custom_call.1} parent=1 // pred_check
      _
    $region23: #{tpu_custom_call.1} parent=1 // pred_check_branch
      %61 = sbr.rel (0) target = $region25
    $region24: #{tpu_custom_call.1} parent=1 // pred_region
      %62 = dma.done [#allocation6], 7168
    $region25: #{tpu_custom_call.1} parent=1 // pred_fallthru
      _
    // Predicated region
    $region26: #{tpu_custom_call.1} parent=1 // pred_check
      _
    $region27: #{tpu_custom_call.1} parent=1 // pred_check_branch
      %64 = sbr.rel (0) target = $region29
    $region28: #{tpu_custom_call.1} parent=1 // pred_region
      %65 = dma.done [#allocation6], 2048
    $region29: #{tpu_custom_call.1} parent=1 // pred_fallthru
      _
    // Predicated region
    $region30: #{tpu_custom_call.1} parent=1 // pred_check
      _
    $region31: #{tpu_custom_call.1} parent=1 // pred_check_branch
      %67 = sbr.rel (0) target = $region33
    $region32: #{tpu_custom_call.1} parent=1 // pred_region
      %68 = dma.done [#allocation9], 256
    $region33: #{tpu_custom_call.1} parent=1 // pred_fallthru
      _
    %v70 = vld [vmem:[#allocation2] sm:$0xff]
    %v71 = vld [vmem:[#allocation5] sm:$0xf]
    %v72 = vld [vmem:[#allocation5 + $0x4] sm:$0xf]
    %v73 = vld [vmem:[#allocation5 + $0x8] sm:$0xf]
    %v74 = vld [vmem:[#allocation5 + $0xc] sm:$0xf]
    %v75 = vld [vmem:[#allocation5 + $0x10] sm:$0xf]
    %v76 = vld [vmem:[#allocation5 + $0x14] sm:$0xf]
    %v77 = vld [vmem:[#allocation5 + $0x18] sm:$0xf]
    %v78 = vld [vmem:[#allocation5 + $0x1c] sm:$0xf]
    %v79 = vld [vmem:[#allocation5 + $0x20] sm:$0xf]
    %v80 = vld [vmem:[#allocation5 + $0x24] sm:$0xf]
    %v81 = vld [vmem:[#allocation5 + $0x28] sm:$0xf]
    %v82 = vld [vmem:[#allocation5 + $0x2c] sm:$0xf]
    %v83 = vld [vmem:[#allocation5 + $0x30] sm:$0xf]
    %v84 = vld [vmem:[#allocation5 + $0x34] sm:$0xf]
    %v85 = vld [vmem:[#allocation5 + $0x38] sm:$0xf]
    %v86 = vld [vmem:[#allocation5 + $0x3c] sm:$0xf]
    %v87 = vpack.c.bf16 %v70, %v70
    %v88 = vld [vmem:[#allocation8] ss:$0 sm:$0xff]
    %v105 = vunpack.c.l.b16 %v71
    %v106 = vunpack.c.l.b16 %v72
    %v107 = vunpack.c.l.b16 %v73
    %v108 = vunpack.c.l.b16 %v74
    %v109 = vunpack.c.l.b16 %v75
    %v110 = vunpack.c.l.b16 %v76
    %v111 = vunpack.c.l.b16 %v77
    %v112 = vunpack.c.l.b16 %v78
    %v113 = vunpack.c.l.b16 %v79
    %v114 = vunpack.c.l.b16 %v80
    %v115 = vunpack.c.l.b16 %v81
    %v116 = vunpack.c.l.b16 %v82
    %v117 = vunpack.c.l.b16 %v83
    %v118 = vunpack.c.l.b16 %v84
    %v119 = vunpack.c.l.b16 %v85
    %v120 = vunpack.c.l.b16 %v86
    %v121 = vpack.c.b16 %v106, %v105
    %v122 = vpack.c.b16 %v108, %v107
    %v123 = vpack.c.b16 %v110, %v109
    %v124 = vpack.c.b16 %v112, %v111
    %v125 = vpack.c.b16 %v114, %v113
    %v126 = vpack.c.b16 %v116, %v115
    %v127 = vpack.c.b16 %v118, %v117
    %v128 = vpack.c.b16 %v120, %v119
    %137 = vmatprep.subr.bf16.mxu0 0
    %138 = vmatpush1.bf16.msra.mxu0 %v121
    %139 = vmatprep.subr.bf16.mxu0 0
    %140 = vmatpush1.bf16.msra.mxu0 %v122
    %141 = vmatprep.subr.bf16.mxu0 0
    %142 = vmatpush1.bf16.msra.mxu0 %v123
    %143 = vmatprep.subr.bf16.mxu0 0
    %144 = vmatpush1.bf16.msra.mxu0 %v124
    %145 = vmatprep.subr.bf16.mxu0 0
    %146 = vmatpush1.bf16.msra.mxu0 %v125
    %147 = vmatprep.subr.bf16.mxu0 0
    %148 = vmatpush1.bf16.msra.mxu0 %v126
    %149 = vmatprep.subr.bf16.mxu0 0
    %150 = vmatpush1.bf16.msra.mxu0 %v127
    %151 = vmatprep.subr.bf16.mxu0 0
    %152 = vmatpush1.bf16.msra.mxu0 %v128
    %153 = vmatprep.subr.bf16.mxu0 0
    %154 = vmatpush1.bf16.msra.mxu0 0
    %155 = vmatprep.subr.bf16.mxu0 0
    %156 = vmatpush1.bf16.msra.mxu0 0
    %157 = vmatprep.subr.bf16.mxu0 0
    %158 = vmatpush1.bf16.msra.mxu0 0
    %159 = vmatprep.subr.bf16.mxu0 0
    %160 = vmatpush1.bf16.msra.mxu0 0
    %161 = vmatprep.subr.bf16.mxu0 0
    %162 = vmatpush1.bf16.msra.mxu0 0
    %163 = vmatprep.subr.bf16.mxu0 0
    %164 = vmatpush1.bf16.msra.mxu0 0
    %165 = vmatprep.subr.bf16.mxu0 0
    %166 = vmatpush1.bf16.msra.mxu0 0
    %167 = vmatprep.subr.bf16.mxu0 0
    %168 = vmatpush1.bf16.msra.mxu0 0
    %169 = vmatprep.mubr.bf16.mxu0 0
    %170 = vmatmul.mubr.bf16.gmra.mrb[0].mxu0 %v87
    %v171 = vpop.f32.mrb[0].mxu0
    %v172 = vadd.f32 %v88, %v171
    %v173 = vpop.f32.mrb[0].mxu0
    %v174 = vpop.f32.mrb[0].mxu0
    %v175 = vpop.f32.mrb[0].mxu0
    %176 = vdwg.mxu0
    %vm177 = vcmp.ge.f32.partialorder %v172, 0.0
    %v178 = vmul.f32 %v172, 0.1
    %v179 = vsel %vm177, %v172, %v178
    %v180 = vld [vmem:[#allocation5 + $0x40] sm:$0xf]
    %v181 = vld [vmem:[#allocation5 + $0x44] sm:$0xf]
    %v182 = vld [vmem:[#allocation5 + $0x48] sm:$0xf]
    %v183 = vld [vmem:[#allocation5 + $0x4c] sm:$0xf]
    %v184 = vld [vmem:[#allocation5 + $0x50] sm:$0xf]
    %v185 = vld [vmem:[#allocation5 + $0x54] sm:$0xf]
    %v186 = vld [vmem:[#allocation5 + $0x58] sm:$0xf]
    %v187 = vld [vmem:[#allocation5 + $0x5c] sm:$0xf]
    %v188 = vld [vmem:[#allocation5 + $0x60] sm:$0xf]
    %v189 = vld [vmem:[#allocation5 + $0x64] sm:$0xf]
    %v190 = vld [vmem:[#allocation5 + $0x68] sm:$0xf]
    %v191 = vld [vmem:[#allocation5 + $0x6c] sm:$0xf]
    %v192 = vld [vmem:[#allocation5 + $0x70] sm:$0xf]
    %v193 = vld [vmem:[#allocation5 + $0x74] sm:$0xf]
    %v194 = vld [vmem:[#allocation5 + $0x78] sm:$0xf]
    %v195 = vld [vmem:[#allocation5 + $0x7c] sm:$0xf]
    %v196 = vpack.c.bf16 %v179, %v179
    %v197 = vld [vmem:[#allocation8 + $0x1] ss:$0 sm:$0xff]
    %v214 = vunpack.c.l.b16 %v180
    %v215 = vunpack.c.l.b16 %v181
    %v216 = vunpack.c.l.b16 %v182
    %v217 = vunpack.c.l.b16 %v183
    %v218 = vunpack.c.l.b16 %v184
    %v219 = vunpack.c.l.b16 %v185
    %v220 = vunpack.c.l.b16 %v186
    %v221 = vunpack.c.l.b16 %v187
    %v222 = vunpack.c.l.b16 %v188
    %v223 = vunpack.c.l.b16 %v189
    %v224 = vunpack.c.l.b16 %v190
    %v225 = vunpack.c.l.b16 %v191
    %v226 = vunpack.c.l.b16 %v192
    %v227 = vunpack.c.l.b16 %v193
    %v228 = vunpack.c.l.b16 %v194
    %v229 = vunpack.c.l.b16 %v195
    %v230 = vpack.c.b16 %v215, %v214
    %v231 = vpack.c.b16 %v217, %v216
    %v232 = vpack.c.b16 %v219, %v218
    %v233 = vpack.c.b16 %v221, %v220
    %v234 = vpack.c.b16 %v223, %v222
    %v235 = vpack.c.b16 %v225, %v224
    %v236 = vpack.c.b16 %v227, %v226
    %v237 = vpack.c.b16 %v229, %v228
    %246 = vmatprep.subr.bf16.mxu0 0
    %247 = vmatpush1.bf16.msra.mxu0 %v230
    %248 = vmatprep.subr.bf16.mxu0 0
    %249 = vmatpush1.bf16.msra.mxu0 %v231
    %250 = vmatprep.subr.bf16.mxu0 0
    %251 = vmatpush1.bf16.msra.mxu0 %v232
    %252 = vmatprep.subr.bf16.mxu0 0
    %253 = vmatpush1.bf16.msra.mxu0 %v233
    %254 = vmatprep.subr.bf16.mxu0 0
    %255 = vmatpush1.bf16.msra.mxu0 %v234
    %256 = vmatprep.subr.bf16.mxu0 0
    %257 = vmatpush1.bf16.msra.mxu0 %v235
    %258 = vmatprep.subr.bf16.mxu0 0
    %259 = vmatpush1.bf16.msra.mxu0 %v236
    %260 = vmatprep.subr.bf16.mxu0 0
    %261 = vmatpush1.bf16.msra.mxu0 %v237
    %262 = vmatprep.subr.bf16.mxu0 0
    %263 = vmatpush1.bf16.msra.mxu0 0
    %264 = vmatprep.subr.bf16.mxu0 0
    %265 = vmatpush1.bf16.msra.mxu0 0
    %266 = vmatprep.subr.bf16.mxu0 0
    %267 = vmatpush1.bf16.msra.mxu0 0
    %268 = vmatprep.subr.bf16.mxu0 0
    %269 = vmatpush1.bf16.msra.mxu0 0
    %270 = vmatprep.subr.bf16.mxu0 0
    %271 = vmatpush1.bf16.msra.mxu0 0
    %272 = vmatprep.subr.bf16.mxu0 0
    %273 = vmatpush1.bf16.msra.mxu0 0
    %274 = vmatprep.subr.bf16.mxu0 0
    %275 = vmatpush1.bf16.msra.mxu0 0
    %276 = vmatprep.subr.bf16.mxu0 0
    %277 = vmatpush1.bf16.msra.mxu0 0
    %278 = vmatprep.mubr.bf16.mxu0 0
    %279 = vmatmul.mubr.bf16.gmra.mrb[0].mxu0 %v196
    %v280 = vpop.f32.mrb[0].mxu0
    %v281 = vadd.f32 %v197, %v280
    %v282 = vpop.f32.mrb[0].mxu0
    %v283 = vpop.f32.mrb[0].mxu0
    %v284 = vpop.f32.mrb[0].mxu0
    %285 = vdwg.mxu0
    %vm286 = vcmp.ge.f32.partialorder %v281, 0.0
    %v287 = vmul.f32 %v281, 0.1
    %v288 = vsel %vm286, %v281, %v287
    %v289 = vld [vmem:[#allocation5 + $0x80] sm:$0xf]
    %v290 = vld [vmem:[#allocation5 + $0x84] sm:$0xf]
    %v291 = vld [vmem:[#allocation5 + $0x88] sm:$0xf]
    %v292 = vld [vmem:[#allocation5 + $0x8c] sm:$0xf]
    %v293 = vld [vmem:[#allocation5 + $0x90] sm:$0xf]
    %v294 = vld [vmem:[#allocation5 + $0x94] sm:$0xf]
    %v295 = vld [vmem:[#allocation5 + $0x98] sm:$0xf]
    %v296 = vld [vmem:[#allocation5 + $0x9c] sm:$0xf]
    %v297 = vld [vmem:[#allocation5 + $0xa0] sm:$0xf]
    %v298 = vld [vmem:[#allocation5 + $0xa4] sm:$0xf]
    %v299 = vld [vmem:[#allocation5 + $0xa8] sm:$0xf]
    %v300 = vld [vmem:[#allocation5 + $0xac] sm:$0xf]
    %v301 = vld [vmem:[#allocation5 + $0xb0] sm:$0xf]
    %v302 = vld [vmem:[#allocation5 + $0xb4] sm:$0xf]
    %v303 = vld [vmem:[#allocation5 + $0xb8] sm:$0xf]
    %v304 = vld [vmem:[#allocation5 + $0xbc] sm:$0xf]
    %v305 = vpack.c.bf16 %v288, %v288
    %v306 = vld [vmem:[#allocation8 + $0x2] ss:$0 sm:$0xff]
    %v323 = vunpack.c.l.b16 %v289
    %v324 = vunpack.c.l.b16 %v290
    %v325 = vunpack.c.l.b16 %v291
    %v326 = vunpack.c.l.b16 %v292
    %v327 = vunpack.c.l.b16 %v293
    %v328 = vunpack.c.l.b16 %v294
    %v329 = vunpack.c.l.b16 %v295
    %v330 = vunpack.c.l.b16 %v296
    %v331 = vunpack.c.l.b16 %v297
    %v332 = vunpack.c.l.b16 %v298
    %v333 = vunpack.c.l.b16 %v299
    %v334 = vunpack.c.l.b16 %v300
    %v335 = vunpack.c.l.b16 %v301
    %v336 = vunpack.c.l.b16 %v302
    %v337 = vunpack.c.l.b16 %v303
    %v338 = vunpack.c.l.b16 %v304
    %v339 = vpack.c.b16 %v324, %v323
    %v340 = vpack.c.b16 %v326, %v325
    %v341 = vpack.c.b16 %v328, %v327
    %v342 = vpack.c.b16 %v330, %v329
    %v343 = vpack.c.b16 %v332, %v331
    %v344 = vpack.c.b16 %v334, %v333
    %v345 = vpack.c.b16 %v336, %v335
    %v346 = vpack.c.b16 %v338, %v337
    %355 = vmatprep.subr.bf16.mxu0 0
    %356 = vmatpush1.bf16.msra.mxu0 %v339
    %357 = vmatprep.subr.bf16.mxu0 0
    %358 = vmatpush1.bf16.msra.mxu0 %v340
    %359 = vmatprep.subr.bf16.mxu0 0
    %360 = vmatpush1.bf16.msra.mxu0 %v341
    %361 = vmatprep.subr.bf16.mxu0 0
    %362 = vmatpush1.bf16.msra.mxu0 %v342
    %363 = vmatprep.subr.bf16.mxu0 0
    %364 = vmatpush1.bf16.msra.mxu0 %v343
    %365 = vmatprep.subr.bf16.mxu0 0
    %366 = vmatpush1.bf16.msra.mxu0 %v344
    %367 = vmatprep.subr.bf16.mxu0 0
    %368 = vmatpush1.bf16.msra.mxu0 %v345
    %369 = vmatprep.subr.bf16.mxu0 0
    %370 = vmatpush1.bf16.msra.mxu0 %v346
    %371 = vmatprep.subr.bf16.mxu0 0
    %372 = vmatpush1.bf16.msra.mxu0 0
    %373 = vmatprep.subr.bf16.mxu0 0
    %374 = vmatpush1.bf16.msra.mxu0 0
    %375 = vmatprep.subr.bf16.mxu0 0
    %376 = vmatpush1.bf16.msra.mxu0 0
    %377 = vmatprep.subr.bf16.mxu0 0
    %378 = vmatpush1.bf16.msra.mxu0 0
    %379 = vmatprep.subr.bf16.mxu0 0
    %380 = vmatpush1.bf16.msra.mxu0 0
    %381 = vmatprep.subr.bf16.mxu0 0
    %382 = vmatpush1.bf16.msra.mxu0 0
    %383 = vmatprep.subr.bf16.mxu0 0
    %384 = vmatpush1.bf16.msra.mxu0 0
    %385 = vmatprep.subr.bf16.mxu0 0
    %386 = vmatpush1.bf16.msra.mxu0 0
    %387 = vmatprep.mubr.bf16.mxu0 0
    %388 = vmatmul.mubr.bf16.gmra.mrb[0].mxu0 %v305
    %v389 = vpop.f32.mrb[0].mxu0
    %v390 = vadd.f32 %v306, %v389
    %v391 = vpop.f32.mrb[0].mxu0
    %v392 = vpop.f32.mrb[0].mxu0
    %v393 = vpop.f32.mrb[0].mxu0
    %394 = vdwg.mxu0
    %vm395 = vcmp.ge.f32.partialorder %v390, 0.0
    %v396 = vmul.f32 %v390, 0.1
    %v397 = vsel %vm395, %v390, %v396
    %v398 = vld [vmem:[#allocation7] sm:$0xff]
    %v399 = vld [vmem:[#allocation7 + $0x8] sm:$0xff]
    %v400 = vld [vmem:[#allocation7 + $0x10] sm:$0xff]
    %v401 = vld [vmem:[#allocation7 + $0x18] sm:$0xff]
    %v402 = vld [vmem:[#allocation7 + $0x20] sm:$0xff]
    %v403 = vld [vmem:[#allocation7 + $0x28] sm:$0xff]
    %v404 = vld [vmem:[#allocation7 + $0x30] sm:$0xff]
    %v405 = vld [vmem:[#allocation7 + $0x38] sm:$0xff]
    %v406 = vld [vmem:[#allocation7 + $0x40] sm:$0xff]
    %v407 = vld [vmem:[#allocation7 + $0x48] sm:$0xff]
    %v408 = vld [vmem:[#allocation7 + $0x50] sm:$0xff]
    %v409 = vld [vmem:[#allocation7 + $0x58] sm:$0xff]
    %v410 = vld [vmem:[#allocation7 + $0x60] sm:$0xff]
    %v411 = vld [vmem:[#allocation7 + $0x68] sm:$0xff]
    %v412 = vld [vmem:[#allocation7 + $0x70] sm:$0xff]
    %v413 = vld [vmem:[#allocation7 + $0x78] sm:$0xff]
    %v414 = vpack.c.bf16 %v397, %v397
    %s415 = scalar_lea.vmem [#allocation8], 3
    %v416 = vld [vmem:[%s415] ss:$8 sm:$0x3]
    %v418 = vlaneseq
    %v419 = vshrl.u32 %v418, 7
    %v420 = vsub.s32 0, %v419
    %v421 = vrot.slane %v416, %v420
    %v422 = vlaneseq
    %v423 = vshrl.u32 %v422, 7
    %v424 = vsub.s32 1, %v423
    %v425 = vrot.slane %v416, %v424
    %v444 = vunpack.c.l.b16 %v398
    %v445 = vunpack.c.h.b16 %v398
    %v446 = vunpack.c.l.b16 %v399
    %v447 = vunpack.c.h.b16 %v399
    %v448 = vunpack.c.l.b16 %v400
    %v449 = vunpack.c.h.b16 %v400
    %v450 = vunpack.c.l.b16 %v401
    %v451 = vunpack.c.h.b16 %v401
    %v452 = vunpack.c.l.b16 %v402
    %v453 = vunpack.c.h.b16 %v402
    %v454 = vunpack.c.l.b16 %v403
    %v455 = vunpack.c.h.b16 %v403
    %v456 = vunpack.c.l.b16 %v404
    %v457 = vunpack.c.h.b16 %v404
    %v458 = vunpack.c.l.b16 %v405
    %v459 = vunpack.c.h.b16 %v405
    %v460 = vunpack.c.l.b16 %v406
    %v461 = vunpack.c.h.b16 %v406
    %v462 = vunpack.c.l.b16 %v407
    %v463 = vunpack.c.h.b16 %v407
    %v464 = vunpack.c.l.b16 %v408
    %v465 = vunpack.c.h.b16 %v408
    %v466 = vunpack.c.l.b16 %v409
    %v467 = vunpack.c.h.b16 %v409
    %v468 = vunpack.c.l.b16 %v410
    %v469 = vunpack.c.h.b16 %v410
    %v470 = vunpack.c.l.b16 %v411
    %v471 = vunpack.c.h.b16 %v411
    %v472 = vunpack.c.l.b16 %v412
    %v473 = vunpack.c.h.b16 %v412
    %v474 = vunpack.c.l.b16 %v413
    %v475 = vunpack.c.h.b16 %v413
    %v476 = vpack.c.b16 %v446, %v444
    %v477 = vpack.c.b16 %v447, %v445
    %v478 = vpack.c.b16 %v450, %v448
    %v479 = vpack.c.b16 %v451, %v449
    %v480 = vpack.c.b16 %v454, %v452
    %v481 = vpack.c.b16 %v455, %v453
    %v482 = vpack.c.b16 %v458, %v456
    %v483 = vpack.c.b16 %v459, %v457
    %v484 = vpack.c.b16 %v462, %v460
    %v485 = vpack.c.b16 %v463, %v461
    %v486 = vpack.c.b16 %v466, %v464
    %v487 = vpack.c.b16 %v467, %v465
    %v488 = vpack.c.b16 %v470, %v468
    %v489 = vpack.c.b16 %v471, %v469
    %v490 = vpack.c.b16 %v474, %v472
    %v491 = vpack.c.b16 %v475, %v473
    %508 = vmatprep.subr.bf16.mxu0 %v477
    %509 = vmatpush1.bf16.msra.mxu0 %v476
    %510 = vmatprep.subr.bf16.mxu0 %v479
    %511 = vmatpush1.bf16.msra.mxu0 %v478
    %512 = vmatprep.subr.bf16.mxu0 %v481
    %513 = vmatpush1.bf16.msra.mxu0 %v480
    %514 = vmatprep.subr.bf16.mxu0 %v483
    %515 = vmatpush1.bf16.msra.mxu0 %v482
    %516 = vmatprep.subr.bf16.mxu0 %v485
    %517 = vmatpush1.bf16.msra.mxu0 %v484
    %518 = vmatprep.subr.bf16.mxu0 %v487
    %519 = vmatpush1.bf16.msra.mxu0 %v486
    %520 = vmatprep.subr.bf16.mxu0 %v489
    %521 = vmatpush1.bf16.msra.mxu0 %v488
    %522 = vmatprep.subr.bf16.mxu0 %v491
    %523 = vmatpush1.bf16.msra.mxu0 %v490
    %524 = vmatprep.subr.bf16.mxu0 0
    %525 = vmatpush1.bf16.msra.mxu0 0
    %526 = vmatprep.subr.bf16.mxu0 0
    %527 = vmatpush1.bf16.msra.mxu0 0
    %528 = vmatprep.subr.bf16.mxu0 0
    %529 = vmatpush1.bf16.msra.mxu0 0
    %530 = vmatprep.subr.bf16.mxu0 0
    %531 = vmatpush1.bf16.msra.mxu0 0
    %532 = vmatprep.subr.bf16.mxu0 0
    %533 = vmatpush1.bf16.msra.mxu0 0
    %534 = vmatprep.subr.bf16.mxu0 0
    %535 = vmatpush1.bf16.msra.mxu0 0
    %536 = vmatprep.subr.bf16.mxu0 0
    %537 = vmatpush1.bf16.msra.mxu0 0
    %538 = vmatprep.subr.bf16.mxu0 0
    %539 = vmatpush1.bf16.msra.mxu0 0
    %540 = vmatprep.mubr.bf16.mxu0 0
    %541 = vmatmul.mubr.bf16.gmra.mrb[0].mxu0 %v414
    %v542 = vpop.f32.mrb[0].mxu0
    %v543 = vadd.f32 %v421, %v542
    %v544 = vpop.f32.mrb[0].mxu0
    %v545 = vadd.f32 %v425, %v544
    %v546 = vpop.f32.mrb[0].mxu0
    %v547 = vpop.f32.mrb[0].mxu0
    %548 = vdwg.mxu0
    %v549 = vmul.f32 %v545, 0.5
    %v550 = vmul.f32 %v549, 1.442695
    %v551 = vpow.pop %v550
    %v552 = vmul.f32 %v70, %v551
    %v553 = vadd.f32 %v543, %v552
    %v554 = vadd.f32 %v545, 1.0
    %v555 = vmul.f32 %v543, %v543
    %v556 = vsub.f32 %v554, %v555
    %v557 = vmul.f32 %v551, %v551
    %v558 = vsub.f32 %v556, %v557
    %559 = vadd.xlane.f32.xlu0 %v558
    %v560 = vpop.xlane.xlu0 %559
    %v561 = vmul.f32 %v560, -0.5
    %v562 = vld [vmem:[#allocation5 + $0xc0] sm:$0xf]
    %v563 = vld [vmem:[#allocation5 + $0xc4] sm:$0xf]
    %v564 = vld [vmem:[#allocation5 + $0xc8] sm:$0xf]
    %v565 = vld [vmem:[#allocation5 + $0xcc] sm:$0xf]
    %v566 = vld [vmem:[#allocation5 + $0xd0] sm:$0xf]
    %v567 = vld [vmem:[#allocation5 + $0xd4] sm:$0xf]
    %v568 = vld [vmem:[#allocation5 + $0xd8] sm:$0xf]
    %v569 = vld [vmem:[#allocation5 + $0xdc] sm:$0xf]
    %v570 = vld [vmem:[#allocation5 + $0xe0] sm:$0xf]
    %v571 = vld [vmem:[#allocation5 + $0xe4] sm:$0xf]
    %v572 = vld [vmem:[#allocation5 + $0xe8] sm:$0xf]
    %v573 = vld [vmem:[#allocation5 + $0xec] sm:$0xf]
    %v574 = vld [vmem:[#allocation5 + $0xf0] sm:$0xf]
    %v575 = vld [vmem:[#allocation5 + $0xf4] sm:$0xf]
    %v576 = vld [vmem:[#allocation5 + $0xf8] sm:$0xf]
    %v577 = vld [vmem:[#allocation5 + $0xfc] sm:$0xf]
    %v578 = vpack.c.bf16 %v553, %v553
    %v579 = vld [vmem:[#allocation8 + $0x4] ss:$0 sm:$0xff]
    %v596 = vunpack.c.l.b16 %v562
    %v597 = vunpack.c.l.b16 %v563
    %v598 = vunpack.c.l.b16 %v564
    %v599 = vunpack.c.l.b16 %v565
    %v600 = vunpack.c.l.b16 %v566
    %v601 = vunpack.c.l.b16 %v567
    %v602 = vunpack.c.l.b16 %v568
    %v603 = vunpack.c.l.b16 %v569
    %v604 = vunpack.c.l.b16 %v570
    %v605 = vunpack.c.l.b16 %v571
    %v606 = vunpack.c.l.b16 %v572
    %v607 = vunpack.c.l.b16 %v573
    %v608 = vunpack.c.l.b16 %v574
    %v609 = vunpack.c.l.b16 %v575
    %v610 = vunpack.c.l.b16 %v576
    %v611 = vunpack.c.l.b16 %v577
    %v612 = vpack.c.b16 %v597, %v596
    %v613 = vpack.c.b16 %v599, %v598
    %v614 = vpack.c.b16 %v601, %v600
    %v615 = vpack.c.b16 %v603, %v602
    %v616 = vpack.c.b16 %v605, %v604
    %v617 = vpack.c.b16 %v607, %v606
    %v618 = vpack.c.b16 %v609, %v608
    %v619 = vpack.c.b16 %v611, %v610
    %628 = vmatprep.subr.bf16.mxu0 0
    %629 = vmatpush1.bf16.msra.mxu0 %v612
    %630 = vmatprep.subr.bf16.mxu0 0
    %631 = vmatpush1.bf16.msra.mxu0 %v613
    %632 = vmatprep.subr.bf16.mxu0 0
    %633 = vmatpush1.bf16.msra.mxu0 %v614
    %634 = vmatprep.subr.bf16.mxu0 0
    %635 = vmatpush1.bf16.msra.mxu0 %v615
    %636 = vmatprep.subr.bf16.mxu0 0
    %637 = vmatpush1.bf16.msra.mxu0 %v616
    %638 = vmatprep.subr.bf16.mxu0 0
    %639 = vmatpush1.bf16.msra.mxu0 %v617
    %640 = vmatprep.subr.bf16.mxu0 0
    %641 = vmatpush1.bf16.msra.mxu0 %v618
    %642 = vmatprep.subr.bf16.mxu0 0
    %643 = vmatpush1.bf16.msra.mxu0 %v619
    %644 = vmatprep.subr.bf16.mxu0 0
    %645 = vmatpush1.bf16.msra.mxu0 0
    %646 = vmatprep.subr.bf16.mxu0 0
    %647 = vmatpush1.bf16.msra.mxu0 0
    %648 = vmatprep.subr.bf16.mxu0 0
    %649 = vmatpush1.bf16.msra.mxu0 0
    %650 = vmatprep.subr.bf16.mxu0 0
    %651 = vmatpush1.bf16.msra.mxu0 0
    %652 = vmatprep.subr.bf16.mxu0 0
    %653 = vmatpush1.bf16.msra.mxu0 0
    %654 = vmatprep.subr.bf16.mxu0 0
    %655 = vmatpush1.bf16.msra.mxu0 0
    %656 = vmatprep.subr.bf16.mxu0 0
    %657 = vmatpush1.bf16.msra.mxu0 0
    %658 = vmatprep.subr.bf16.mxu0 0
    %659 = vmatpush1.bf16.msra.mxu0 0
    %660 = vmatprep.mubr.bf16.mxu0 0
    %661 = vmatmul.mubr.bf16.gmra.mrb[0].mxu0 %v578
    %v662 = vpop.f32.mrb[0].mxu0
    %v663 = vadd.f32 %v579, %v662
    %v664 = vpop.f32.mrb[0].mxu0
    %v665 = vpop.f32.mrb[0].mxu0
    %v666 = vpop.f32.mrb[0].mxu0
    %667 = vdwg.mxu0
    %vm668 = vcmp.ge.f32.partialorder %v663, 0.0
    %v669 = vmul.f32 %v663, 0.1
    %v670 = vsel %vm668, %v663, %v669
    %v671 = vld [vmem:[#allocation5 + $0x100] sm:$0xf]
    %v672 = vld [vmem:[#allocation5 + $0x104] sm:$0xf]
    %v673 = vld [vmem:[#allocation5 + $0x108] sm:$0xf]
    %v674 = vld [vmem:[#allocation5 + $0x10c] sm:$0xf]
    %v675 = vld [vmem:[#allocation5 + $0x110] sm:$0xf]
    %v676 = vld [vmem:[#allocation5 + $0x114] sm:$0xf]
    %v677 = vld [vmem:[#allocation5 + $0x118] sm:$0xf]
    %v678 = vld [vmem:[#allocation5 + $0x11c] sm:$0xf]
    %v679 = vld [vmem:[#allocation5 + $0x120] sm:$0xf]
    %v680 = vld [vmem:[#allocation5 + $0x124] sm:$0xf]
    %v681 = vld [vmem:[#allocation5 + $0x128] sm:$0xf]
    %v682 = vld [vmem:[#allocation5 + $0x12c] sm:$0xf]
    %v683 = vld [vmem:[#allocation5 + $0x130] sm:$0xf]
    %v684 = vld [vmem:[#allocation5 + $0x134] sm:$0xf]
    %v685 = vld [vmem:[#allocation5 + $0x138] sm:$0xf]
    %v686 = vld [vmem:[#allocation5 + $0x13c] sm:$0xf]
    %v687 = vpack.c.bf16 %v670, %v670
    %v688 = vld [vmem:[#allocation8 + $0x5] ss:$0 sm:$0xff]
    %v705 = vunpack.c.l.b16 %v671
    %v706 = vunpack.c.l.b16 %v672
    %v707 = vunpack.c.l.b16 %v673
    %v708 = vunpack.c.l.b16 %v674
    %v709 = vunpack.c.l.b16 %v675
    %v710 = vunpack.c.l.b16 %v676
    %v711 = vunpack.c.l.b16 %v677
    %v712 = vunpack.c.l.b16 %v678
    %v713 = vunpack.c.l.b16 %v679
    %v714 = vunpack.c.l.b16 %v680
    %v715 = vunpack.c.l.b16 %v681
    %v716 = vunpack.c.l.b16 %v682
    %v717 = vunpack.c.l.b16 %v683
    %v718 = vunpack.c.l.b16 %v684
    %v719 = vunpack.c.l.b16 %v685
    %v720 = vunpack.c.l.b16 %v686
    %v721 = vpack.c.b16 %v706, %v705
    %v722 = vpack.c.b16 %v708, %v707
    %v723 = vpack.c.b16 %v710, %v709
    %v724 = vpack.c.b16 %v712, %v711
    %v725 = vpack.c.b16 %v714, %v713
    %v726 = vpack.c.b16 %v716, %v715
    %v727 = vpack.c.b16 %v718, %v717
    %v728 = vpack.c.b16 %v720, %v719
    %737 = vmatprep.subr.bf16.mxu0 0
    %738 = vmatpush1.bf16.msra.mxu0 %v721
    %739 = vmatprep.subr.bf16.mxu0 0
    %740 = vmatpush1.bf16.msra.mxu0 %v722
    %741 = vmatprep.subr.bf16.mxu0 0
    %742 = vmatpush1.bf16.msra.mxu0 %v723
    %743 = vmatprep.subr.bf16.mxu0 0
    %744 = vmatpush1.bf16.msra.mxu0 %v724
    %745 = vmatprep.subr.bf16.mxu0 0
    %746 = vmatpush1.bf16.msra.mxu0 %v725
    %747 = vmatprep.subr.bf16.mxu0 0
    %748 = vmatpush1.bf16.msra.mxu0 %v726
    %749 = vmatprep.subr.bf16.mxu0 0
    %750 = vmatpush1.bf16.msra.mxu0 %v727
    %751 = vmatprep.subr.bf16.mxu0 0
    %752 = vmatpush1.bf16.msra.mxu0 %v728
    %753 = vmatprep.subr.bf16.mxu0 0
    %754 = vmatpush1.bf16.msra.mxu0 0
    %755 = vmatprep.subr.bf16.mxu0 0
    %756 = vmatpush1.bf16.msra.mxu0 0
    %757 = vmatprep.subr.bf16.mxu0 0
    %758 = vmatpush1.bf16.msra.mxu0 0
    %759 = vmatprep.subr.bf16.mxu0 0
    %760 = vmatpush1.bf16.msra.mxu0 0
    %761 = vmatprep.subr.bf16.mxu0 0
    %762 = vmatpush1.bf16.msra.mxu0 0
    %763 = vmatprep.subr.bf16.mxu0 0
    %764 = vmatpush1.bf16.msra.mxu0 0
    %765 = vmatprep.subr.bf16.mxu0 0
    %766 = vmatpush1.bf16.msra.mxu0 0
    %767 = vmatprep.subr.bf16.mxu0 0
    %768 = vmatpush1.bf16.msra.mxu0 0
    %769 = vmatprep.mubr.bf16.mxu0 0
    %770 = vmatmul.mubr.bf16.gmra.mrb[0].mxu0 %v687
    %v771 = vpop.f32.mrb[0].mxu0
    %v772 = vadd.f32 %v688, %v771
    %v773 = vpop.f32.mrb[0].mxu0
    %v774 = vpop.f32.mrb[0].mxu0
    %v775 = vpop.f32.mrb[0].mxu0
    %776 = vdwg.mxu0
    %vm777 = vcmp.ge.f32.partialorder %v772, 0.0
    %v778 = vmul.f32 %v772, 0.1
    %v779 = vsel %vm777, %v772, %v778
    %v780 = vld [vmem:[#allocation5 + $0x140] sm:$0xf]
    %v781 = vld [vmem:[#allocation5 + $0x144] sm:$0xf]
    %v782 = vld [vmem:[#allocation5 + $0x148] sm:$0xf]
    %v783 = vld [vmem:[#allocation5 + $0x14c] sm:$0xf]
    %v784 = vld [vmem:[#allocation5 + $0x150] sm:$0xf]
    %v785 = vld [vmem:[#allocation5 + $0x154] sm:$0xf]
    %v786 = vld [vmem:[#allocation5 + $0x158] sm:$0xf]
    %v787 = vld [vmem:[#allocation5 + $0x15c] sm:$0xf]
    %v788 = vld [vmem:[#allocation5 + $0x160] sm:$0xf]
    %v789 = vld [vmem:[#allocation5 + $0x164] sm:$0xf]
    %v790 = vld [vmem:[#allocation5 + $0x168] sm:$0xf]
    %v791 = vld [vmem:[#allocation5 + $0x16c] sm:$0xf]
    %v792 = vld [vmem:[#allocation5 + $0x170] sm:$0xf]
    %v793 = vld [vmem:[#allocation5 + $0x174] sm:$0xf]
    %v794 = vld [vmem:[#allocation5 + $0x178] sm:$0xf]
    %v795 = vld [vmem:[#allocation5 + $0x17c] sm:$0xf]
    %v796 = vpack.c.bf16 %v779, %v779
    %v797 = vld [vmem:[#allocation8 + $0x6] ss:$0 sm:$0xff]
    %v814 = vunpack.c.l.b16 %v780
    %v815 = vunpack.c.l.b16 %v781
    %v816 = vunpack.c.l.b16 %v782
    %v817 = vunpack.c.l.b16 %v783
    %v818 = vunpack.c.l.b16 %v784
    %v819 = vunpack.c.l.b16 %v785
    %v820 = vunpack.c.l.b16 %v786
    %v821 = vunpack.c.l.b16 %v787
    %v822 = vunpack.c.l.b16 %v788
    %v823 = vunpack.c.l.b16 %v789
    %v824 = vunpack.c.l.b16 %v790
    %v825 = vunpack.c.l.b16 %v791
    %v826 = vunpack.c.l.b16 %v792
    %v827 = vunpack.c.l.b16 %v793
    %v828 = vunpack.c.l.b16 %v794
    %v829 = vunpack.c.l.b16 %v795
    %v830 = vpack.c.b16 %v815, %v814
    %v831 = vpack.c.b16 %v817, %v816
    %v832 = vpack.c.b16 %v819, %v818
    %v833 = vpack.c.b16 %v821, %v820
    %v834 = vpack.c.b16 %v823, %v822
    %v835 = vpack.c.b16 %v825, %v824
    %v836 = vpack.c.b16 %v827, %v826
    %v837 = vpack.c.b16 %v829, %v828
    %846 = vmatprep.subr.bf16.mxu0 0
    %847 = vmatpush1.bf16.msra.mxu0 %v830
    %848 = vmatprep.subr.bf16.mxu0 0
    %849 = vmatpush1.bf16.msra.mxu0 %v831
    %850 = vmatprep.subr.bf16.mxu0 0
    %851 = vmatpush1.bf16.msra.mxu0 %v832
    %852 = vmatprep.subr.bf16.mxu0 0
    %853 = vmatpush1.bf16.msra.mxu0 %v833
    %854 = vmatprep.subr.bf16.mxu0 0
    %855 = vmatpush1.bf16.msra.mxu0 %v834
    %856 = vmatprep.subr.bf16.mxu0 0
    %857 = vmatpush1.bf16.msra.mxu0 %v835
    %858 = vmatprep.subr.bf16.mxu0 0
    %859 = vmatpush1.bf16.msra.mxu0 %v836
    %860 = vmatprep.subr.bf16.mxu0 0
    %861 = vmatpush1.bf16.msra.mxu0 %v837
    %862 = vmatprep.subr.bf16.mxu0 0
    %863 = vmatpush1.bf16.msra.mxu0 0
    %864 = vmatprep.subr.bf16.mxu0 0
    %865 = vmatpush1.bf16.msra.mxu0 0
    %866 = vmatprep.subr.bf16.mxu0 0
    %867 = vmatpush1.bf16.msra.mxu0 0
    %868 = vmatprep.subr.bf16.mxu0 0
    %869 = vmatpush1.bf16.msra.mxu0 0
    %870 = vmatprep.subr.bf16.mxu0 0
    %871 = vmatpush1.bf16.msra.mxu0 0
    %872 = vmatprep.subr.bf16.mxu0 0
    %873 = vmatpush1.bf16.msra.mxu0 0
    %874 = vmatprep.subr.bf16.mxu0 0
    %875 = vmatpush1.bf16.msra.mxu0 0
    %876 = vmatprep.subr.bf16.mxu0 0
    %877 = vmatpush1.bf16.msra.mxu0 0
    %878 = vmatprep.mubr.bf16.mxu0 0
    %879 = vmatmul.mubr.bf16.gmra.mrb[0].mxu0 %v796
    %v880 = vpop.f32.mrb[0].mxu0
    %v881 = vadd.f32 %v797, %v880
    %v882 = vpop.f32.mrb[0].mxu0
    %v883 = vpop.f32.mrb[0].mxu0
    %v884 = vpop.f32.mrb[0].mxu0
    %885 = vdwg.mxu0
    %vm886 = vcmp.ge.f32.partialorder %v881, 0.0
    %v887 = vmul.f32 %v881, 0.1
    %v888 = vsel %vm886, %v881, %v887
    %v889 = vld [vmem:[#allocation5 + $0x180] sm:$0xf]
    %v890 = vld [vmem:[#allocation5 + $0x184] sm:$0xf]
    %v891 = vld [vmem:[#allocation5 + $0x188] sm:$0xf]
    %v892 = vld [vmem:[#allocation5 + $0x18c] sm:$0xf]
    %v893 = vld [vmem:[#allocation5 + $0x190] sm:$0xf]
    %v894 = vld [vmem:[#allocation5 + $0x194] sm:$0xf]
    %v895 = vld [vmem:[#allocation5 + $0x198] sm:$0xf]
    %v896 = vld [vmem:[#allocation5 + $0x19c] sm:$0xf]
    %v897 = vld [vmem:[#allocation5 + $0x1a0] sm:$0xf]
    %v898 = vld [vmem:[#allocation5 + $0x1a4] sm:$0xf]
    %v899 = vld [vmem:[#allocation5 + $0x1a8] sm:$0xf]
    %v900 = vld [vmem:[#allocation5 + $0x1ac] sm:$0xf]
    %v901 = vld [vmem:[#allocation5 + $0x1b0] sm:$0xf]
    %v902 = vld [vmem:[#allocation5 + $0x1b4] sm:$0xf]
    %v903 = vld [vmem:[#allocation5 + $0x1b8] sm:$0xf]
    %v904 = vld [vmem:[#allocation5 + $0x1bc] sm:$0xf]
    %v905 = vpack.c.bf16 %v888, %v888
    %v906 = vld [vmem:[#allocation8 + $0x7] ss:$0 sm:$0xff]
    %v923 = vunpack.c.l.b16 %v889
    %v924 = vunpack.c.l.b16 %v890
    %v925 = vunpack.c.l.b16 %v891
    %v926 = vunpack.c.l.b16 %v892
    %v927 = vunpack.c.l.b16 %v893
    %v928 = vunpack.c.l.b16 %v894
    %v929 = vunpack.c.l.b16 %v895
    %v930 = vunpack.c.l.b16 %v896
    %v931 = vunpack.c.l.b16 %v897
    %v932 = vunpack.c.l.b16 %v898
    %v933 = vunpack.c.l.b16 %v899
    %v934 = vunpack.c.l.b16 %v900
    %v935 = vunpack.c.l.b16 %v901
    %v936 = vunpack.c.l.b16 %v902
    %v937 = vunpack.c.l.b16 %v903
    %v938 = vunpack.c.l.b16 %v904
    %v939 = vpack.c.b16 %v924, %v923
    %v940 = vpack.c.b16 %v926, %v925
    %v941 = vpack.c.b16 %v928, %v927
    %v942 = vpack.c.b16 %v930, %v929
    %v943 = vpack.c.b16 %v932, %v931
    %v944 = vpack.c.b16 %v934, %v933
    %v945 = vpack.c.b16 %v936, %v935
    %v946 = vpack.c.b16 %v938, %v937
    %955 = vmatprep.subr.bf16.mxu0 0
    %956 = vmatpush1.bf16.msra.mxu0 %v939
    %957 = vmatprep.subr.bf16.mxu0 0
    %958 = vmatpush1.bf16.msra.mxu0 %v940
    %959 = vmatprep.subr.bf16.mxu0 0
    %960 = vmatpush1.bf16.msra.mxu0 %v941
    %961 = vmatprep.subr.bf16.mxu0 0
    %962 = vmatpush1.bf16.msra.mxu0 %v942
    %963 = vmatprep.subr.bf16.mxu0 0
    %964 = vmatpush1.bf16.msra.mxu0 %v943
    %965 = vmatprep.subr.bf16.mxu0 0
    %966 = vmatpush1.bf16.msra.mxu0 %v944
    %967 = vmatprep.subr.bf16.mxu0 0
    %968 = vmatpush1.bf16.msra.mxu0 %v945
    %969 = vmatprep.subr.bf16.mxu0 0
    %970 = vmatpush1.bf16.msra.mxu0 %v946
    %971 = vmatprep.subr.bf16.mxu0 0
    %972 = vmatpush1.bf16.msra.mxu0 0
    %973 = vmatprep.subr.bf16.mxu0 0
    %974 = vmatpush1.bf16.msra.mxu0 0
    %975 = vmatprep.subr.bf16.mxu0 0
    %976 = vmatpush1.bf16.msra.mxu0 0
    %977 = vmatprep.subr.bf16.mxu0 0
    %978 = vmatpush1.bf16.msra.mxu0 0
    %979 = vmatprep.subr.bf16.mxu0 0
    %980 = vmatpush1.bf16.msra.mxu0 0
    %981 = vmatprep.subr.bf16.mxu0 0
    %982 = vmatpush1.bf16.msra.mxu0 0
    %983 = vmatprep.subr.bf16.mxu0 0
    %984 = vmatpush1.bf16.msra.mxu0 0
    %985 = vmatprep.subr.bf16.mxu0 0
    %986 = vmatpush1.bf16.msra.mxu0 0
    %987 = vmatprep.mubr.bf16.mxu0 0
    %988 = vmatmul.mubr.bf16.gmra.mrb[0].mxu0 %v905
    %v989 = vpop.f32.mrb[0].mxu0
    %v990 = vadd.f32 %v906, %v989
    %v991 = vpop.f32.mrb[0].mxu0
    %v992 = vpop.f32.mrb[0].mxu0
    %v993 = vpop.f32.mrb[0].mxu0
    %994 = vdwg.mxu0
    %v995 = vlaneseq
    %v996 = vand.u32 %v995, 127
    %vm997 = vcmp.eq.s32.totalorder %v996, 127
    %v998 = vsel %vm997, %v561, %v545
    %999 = vst [vmem:[#allocation10] sm:$0xff] %v990
    %1000 = vst [vmem:[#allocation10 + $0x8] sm:$0xff] %v543
    %1001 = vst [vmem:[#allocation10 + $0x10] sm:$0xff] %v998
    %1002 = vst [vmem:[#allocation10 + $0x18] sm:$0xff] %v553
    // Predicated region
    $region34: #{tpu_custom_call.1} parent=1 // pred_check
      _
    $region35: #{tpu_custom_call.1} parent=1 // pred_check_branch
      %1004 = sbr.rel (0) target = $region37
    $region36: #{tpu_custom_call.1} parent=1 // pred_region
      %s1006 = ssub.s32 512, 512
      %1007 = vsyncadd [#allocation4], %s1006
      %s1009 = sshll.u32 [#allocation10], 4
      %s1010 = int_to_ptr.vmem [resolvable:$true] %s1009
      %1012 = dma.vmem_to_hbm [thread:$0]  %s1010, 512, %s4, [#allocation4]
    $region37: #{tpu_custom_call.1} parent=1 // pred_fallthru
      _
    // Predicated region
    $region38: #{tpu_custom_call.1} parent=1 // pred_check
      _
    $region39: #{tpu_custom_call.1} parent=1 // pred_check_branch
      %1014 = sbr.rel (0) target = $region41
    $region40: #{tpu_custom_call.1} parent=1 // pred_region
      %1015 = dma.done [#allocation4], 512
    $region41: #{tpu_custom_call.1} parent=1 // pred_fallthru
      _
    %1016 = vsyncpa [#allocation3], 1
    %1017 = vsyncpa [#allocation6], 1
    %1018 = vsyncpa [#allocation9], 1
    %1019 = vsyncpa [#allocation4], 1

</llo_original>
